<compile_context>
chip_gen: v7x
topology: tpu7x:2x2x1
jax: 0.10.0
libtpu: 0.0.40
codegen_flags: <defaults>
</compile_context>

<pallas_src>
import functools

import jax
import jax.numpy as jnp
from jax.experimental import pallas as pl
from jax.experimental.pallas import tpu as pltpu

BN_EPS = 1e-5


def _round_up(x, m):
    return ((x + m - 1) // m) * m


def _vmem_limit_bytes():
    """Generation-aware scoped-VMEM limit (leave headroom for compiler scratch)."""
    try:
        cap = int(pltpu.get_tpu_info().vmem_capacity_bytes)
    except Exception:
        cap = 0
    if cap <= 0:
        cap = 64 * 1024 * 1024  # conservative: v7x per-TensorCore VMEM
    return min((cap * 3) // 4, 96 * 1024 * 1024)


def _pick_stats_th(H, W2, C2, itemsize, budget_bytes):
    """Largest divisor of H whose (lane-padded) input tile fits the budget."""
    lane_bytes = _round_up(max(C2, 1), 128) * itemsize
    row_bytes = max(W2, 1) * lane_bytes
    th = 1
    for cand in range(1, H + 1):
        if H % cand == 0 and cand * row_bytes <= budget_bytes:
            th = cand
    return th


def _pick_pass2_tiles(N, H, W2, C2, itemsize, budget_bytes, m_target=256):
    """(Nb, Th): Th = largest even divisor of H fitting the budget; Nb grows
    (dividing N) until the matmul M dimension reaches ~m_target or budget."""
    lane_bytes = _round_up(max(C2, 1), 128) * itemsize
    row_bytes = max(W2, 1) * lane_bytes
    th = 2
    for cand in range(2, H + 1, 2):
        if H % cand == 0 and cand * row_bytes <= budget_bytes:
            th = cand
    nb = 1
    for cand in range(2, N + 1):
        if N % cand != 0:
            continue
        if cand * th * row_bytes > budget_bytes:
            break
        if nb * (th // 2) * W2 >= m_target:
            break
        nb = cand
    return nb, th


# ---------------- pass 1: per-channel batch statistics ----------------------

def _bn_stats_kernel(x_ref, sum_ref, sq_ref):
    # x_ref: (1, Th, W2, 2*Cin); sum_ref / sq_ref: (1, 1, 2*Cin) per-batch
    # partial accumulators (resident across the H "arbitrary" axis only, so
    # the N axis can shard across v7x's two TensorCores).
    @pl.when(pl.program_id(1) == 0)
    def _init():
        sum_ref[...] = jnp.zeros_like(sum_ref)
        sq_ref[...] = jnp.zeros_like(sq_ref)

    x = x_ref[...].astype(jnp.float32)
    c2 = x.shape[-1]
    sum_ref[...] += jnp.sum(x, axis=(0, 1, 2)).reshape(1, 1, c2)
    sq_ref[...] += jnp.sum(x * x, axis=(0, 1, 2)).reshape(1, 1, c2)


# -------- pass 2: fused BN(scale/shift) + ReLU + 2x2 pre-pool + 1x1 conv ----

def _transition_tile_kernel(x_ref, scale_ref, shift_ref, w_ref, b_ref, o_ref,
                            *, cin):
    # x_ref:     (Nb, Th, W/2, 2*Cin)  width-paired NHWC tile
    # scale_ref: (1, 2*Cin)            BN scale, duplicated per W-pair half
    # shift_ref: (1, 2*Cin)
    # w_ref:     (Cin, CoutP)          1x1-conv weight (bf16 by default)
    # b_ref:     (1, CoutP)            conv bias (f32, zero in padded lanes)
    # o_ref:     (Nb, Th//2, W/2, CoutP)
    x = x_ref[...].astype(jnp.float32)
    nb, th, w2, c2 = x.shape
    coutp = w_ref.shape[1]

    # BatchNorm (precomputed scale/shift) + ReLU: one FMA + one max per element.
    xr = jnp.maximum(x * scale_ref[...] + shift_ref[...], 0.0)

    # 2x2 average pool BEFORE the conv (linear ops commute):
    #   width pairs sit in the two lane halves -> one VPU add,
    #   height pairs are adjacent leading rows -> leading-dim reshape + add.
    xr = xr.reshape(nb * th, w2, c2)                  # leading-dim merge (free)
    wp = xr[..., :cin] + xr[..., cin:]                # (Nb*Th, W2, Cin)
    wp = wp.reshape((nb * th) // 2, 2, w2, cin)       # leading dims only (free)
    pooled = (wp[:, 0] + wp[:, 1]) * 0.25             # (Nb*Th//2, W2, Cin)

    # 1x1 conv == channel matmul on the MXU (bf16 operands, f32 accumulate).
    # Note: this collapse is 8-aligned here (W2 % 8 == 0); for W2 not a
    # multiple of 8 it may trigger a Mosaic relayout (audit with lower_as_mlir).
    a = pooled.reshape((nb * th // 2) * w2, cin)
    y = jnp.dot(a.astype(w_ref.dtype), w_ref[...],
                preferred_element_type=jnp.float32)
    y = y + b_ref[...].astype(jnp.float32)
    o_ref[...] = y.reshape(nb, th // 2, w2, coutp).astype(o_ref.dtype)


# ------------------------------- wrappers -----------------------------------

def transition_forward_nhwc(x_nhwc, gamma, beta, conv_w_oihw, conv_b,
                            *, matmul_dtype=jnp.bfloat16):
    """NHWC Transition forward. Returns (N, H//2, W//2, Cout) in x's dtype."""
    N, H, W, Cin = x_nhwc.shape
    Cout = conv_w_oihw.shape[0]
    assert conv_w_oihw.shape == (Cout, Cin, 1, 1)
    assert H % 2 == 0 and W % 2 == 0, "AvgPool2d(2,2) needs even spatial dims"

    W2 = W // 2
    C2 = 2 * Cin
    CoutP = _round_up(Cout, 128)           # lane-dense output stores
    itemsize = jnp.dtype(x_nhwc.dtype).itemsize

    vmem_limit = _vmem_limit_bytes()
    big_vmem = vmem_limit >= 64 * 1024 * 1024
    pass1_budget = (8 if big_vmem else 6) * 1024 * 1024
    pass2_budget = (8 if big_vmem else 4) * 1024 * 1024

    # Free contiguous view: pair adjacent width pixels on the lane axis.
    x_r = x_nhwc.reshape(N, H, W2, C2)

    # ---- pass 1: batch statistics (training-mode BatchNorm) ----
    Th1 = _pick_stats_th(H, W2, C2, itemsize, pass1_budget)
    grid1 = (N, H // Th1)
    stat_spec = pl.BlockSpec((1, 1, C2), lambda n, h: (n, 0, 0))
    sums, sqs = pl.pallas_call(
        _bn_stats_kernel,
        grid=grid1,
        in_specs=[pl.BlockSpec((1, Th1, W2, C2), lambda n, h: (n, h, 0, 0))],
        out_specs=[stat_spec, stat_spec],
        out_shape=(jax.ShapeDtypeStruct((N, 1, C2), jnp.float32),
                   jax.ShapeDtypeStruct((N, 1, C2), jnp.float32)),
        compiler_params=pltpu.CompilerParams(
            dimension_semantics=("parallel", "arbitrary"),
            vmem_limit_bytes=vmem_limit),
    )(x_r)

    # Reduce the per-batch partials, fold into scale/shift.
    sum_c2 = jnp.sum(sums, axis=(0, 1))
    sq_c2 = jnp.sum(sqs, axis=(0, 1))
    sum_x = sum_c2[:Cin] + sum_c2[Cin:]
    sum_x2 = sq_c2[:Cin] + sq_c2[Cin:]
    count = jnp.float32(N * H * W)
    mean = sum_x / count
    var = jnp.maximum(sum_x2 / count - mean * mean, 0.0)  # biased variance
    scale = gamma.astype(jnp.float32) * jax.lax.rsqrt(var + BN_EPS)
    shift = beta.astype(jnp.float32) - mean * scale
    scale2 = jnp.tile(scale, 2).reshape(1, C2)
    shift2 = jnp.tile(shift, 2).reshape(1, C2)

    # 1x1 conv weight as (Cin, CoutP) matmul operand; bf16 by default so the
    # matmul takes the native MXU path; Cout padded to 128 lanes.
    w_mat = jnp.transpose(conv_w_oihw[:, :, 0, 0], (1, 0)).astype(matmul_dtype)
    w_pad = jnp.zeros((Cin, CoutP), matmul_dtype).at[:, :Cout].set(w_mat)
    b_pad = jnp.zeros((1, CoutP), jnp.float32).at[:, :Cout].set(
        conv_b.astype(jnp.float32))

    # ---- pass 2: fused BN + ReLU + pre-pool + 1x1 conv ----
    Nb, Th = _pick_pass2_tiles(N, H, W2, C2, itemsize, pass2_budget)
    grid2 = (N // Nb, H // Th)

    kernel = functools.partial(_transition_tile_kernel, cin=Cin)
    out_p = pl.pallas_call(
        kernel,
        grid=grid2,
        in_specs=[
            pl.BlockSpec((Nb, Th, W2, C2), lambda n, h: (n, h, 0, 0)),
            pl.BlockSpec((1, C2), lambda n, h: (0, 0)),
            pl.BlockSpec((1, C2), lambda n, h: (0, 0)),
            pl.BlockSpec((Cin, CoutP), lambda n, h: (0, 0)),
            pl.BlockSpec((1, CoutP), lambda n, h: (0, 0)),
        ],
        out_specs=pl.BlockSpec((Nb, Th // 2, W2, CoutP),
                               lambda n, h: (n, h, 0, 0)),
        out_shape=jax.ShapeDtypeStruct((N, H // 2, W2, CoutP), x_nhwc.dtype),
        compiler_params=pltpu.CompilerParams(
            dimension_semantics=("parallel", "parallel"),
            vmem_limit_bytes=vmem_limit),
    )(x_r, scale2, shift2, w_pad, b_pad)

    # For standard DenseNet Cout is a multiple of 128 and this slice is a
    # no-op; otherwise consumers that can handle padded channels should take
    # out_p directly to avoid an extra HBM pass.
    return out_p[..., :Cout] if CoutP != Cout else out_p


def transition_forward(x_nchw, gamma, beta, conv_w_oihw, conv_b, **kwargs):
    """NCHW convenience wrapper matching the PyTorch module's layout.

    For best performance keep the network NHWC end-to-end and call
    transition_forward_nhwc directly (avoids two full-tensor HBM transposes).
    """
    x_nhwc = jnp.transpose(x_nchw, (0, 2, 3, 1))
    out_nhwc = transition_forward_nhwc(x_nhwc, gamma, beta, conv_w_oihw,
                                       conv_b, **kwargs)
    return jnp.transpose(out_nhwc, (0, 3, 1, 2))


if __name__ == "__main__":
    # Small shapes consistent with a DenseNet transition: Cout = Cin // 2.
    N, Cin, H, W = 2, 4, 16, 16
    Cout = Cin // 2

    key = jax.random.PRNGKey(0)
    kx, kg, kb, kw, kc = jax.random.split(key, 5)

    x = jax.random.normal(kx, (N, Cin, H, W), dtype=jnp.float32)
    gamma = 1.0 + 0.1 * jax.random.normal(kg, (Cin,), dtype=jnp.float32)
    beta = 0.1 * jax.random.normal(kb, (Cin,), dtype=jnp.float32)
    conv_w = jax.random.normal(kw, (Cout, Cin, 1, 1), dtype=jnp.float32) / jnp.sqrt(Cin)
    conv_b = 0.1 * jax.random.normal(kc, (Cout,), dtype=jnp.float32)

    out = transition_forward(x, gamma, beta, conv_w, conv_b)
    out = jax.block_until_ready(out)

    # Pure-JAX reference (training-mode BN: batch stats, biased variance).
    # bf16-consistent: pool first (linear ops commute), cast pooled activation
    # and weight to bf16, accumulate in f32 -- mirroring the kernel's MXU path.
    xt = jnp.transpose(x, (0, 2, 3, 1)).astype(jnp.float32)
    m = jnp.mean(xt, axis=(0, 1, 2), keepdims=True)
    v = jnp.mean((xt - m) ** 2, axis=(0, 1, 2), keepdims=True)
    xr = jnp.maximum((xt - m) * jax.lax.rsqrt(v + BN_EPS) * gamma + beta, 0.0)
    pooled = xr.reshape(N, H // 2, 2, W // 2, 2, Cin).mean(axis=(2, 4))
    w_ref = jnp.transpose(conv_w[:, :, 0, 0], (1, 0)).astype(jnp.bfloat16)
    yr = jnp.einsum("nhwc,co->nhwo", pooled.astype(jnp.bfloat16), w_ref,
                    preferred_element_type=jnp.float32) + conv_b
    ref = jnp.transpose(yr, (0, 3, 1, 2)).astype(out.dtype)

    assert out.shape == (N, Cout, H // 2, W // 2), out.shape
    max_err = float(jnp.max(jnp.abs(out - ref)))
    # Tolerance covers rare bf16 rounding flips between the single-pass batch
    # stats in the kernel and the two-pass stats of the reference.
    assert max_err < 1e-2, max_err
    print("KERNEL_OK")
</pallas_src>

<mosaic_0001>
module attributes {stable_mosaic.version = 11 : i64} {
  func.func @_bn_stats_kernel(%arg0: i32, %arg1: i32, %arg2: memref<1x16x8x8xf32, #tpu.memory_space<vmem>>, %arg3: memref<1x1x8xf32, #tpu.memory_space<vmem>>, %arg4: memref<1x1x8xf32, #tpu.memory_space<vmem>>) attributes {dimension_semantics = [#tpu.dimension_semantics<parallel>, #tpu.dimension_semantics<arbitrary>], iteration_bounds = array<i64: 2, 1>, scalar_prefetch = 0 : i64, scratch_operands = 0 : i64, tpu.core_type = #tpu.core_type<tc>, window_params = [{transform_indices = @transform_0, window_bounds = array<i64: 1, 16, 8, 8>}, {transform_indices = @transform_1, window_bounds = array<i64: 1, 1, 8>}, {transform_indices = @transform_2, window_bounds = array<i64: 1, 1, 8>}]} {
    %c0_i32 = arith.constant 0 : i32
    %0 = arith.cmpi eq, %arg1, %c0_i32 : i32
    %1 = arith.extui %0 : i1 to i32
    %c0_i32_0 = arith.constant 0 : i32
    %2 = arith.cmpi ne, %1, %c0_i32_0 : i32
    scf.if %2 {
      %cst_17 = arith.constant 0.000000e+00 : f32
      %15 = vector.broadcast %cst_17 : f32 to vector<1x1x8xf32>
      %c0_18 = arith.constant 0 : index
      %c0_19 = arith.constant 0 : index
      %c0_20 = arith.constant 0 : index
      %16 = vector.load %arg3[%c0_18, %c0_19, %c0_20] : memref<1x1x8xf32, #tpu.memory_space<vmem>>, vector<1x1x8xf32>
      tpu.vector_store %arg3[%c0_18, %c0_19, %c0_20], %15 {strides = array<i32>} : memref<1x1x8xf32, #tpu.memory_space<vmem>>, vector<1x1x8xf32>,
      %cst_21 = arith.constant 0.000000e+00 : f32
      %17 = vector.broadcast %cst_21 : f32 to vector<1x1x8xf32>
      %c0_22 = arith.constant 0 : index
      %c0_23 = arith.constant 0 : index
      %c0_24 = arith.constant 0 : index
      %18 = vector.load %arg4[%c0_22, %c0_23, %c0_24] : memref<1x1x8xf32, #tpu.memory_space<vmem>>, vector<1x1x8xf32>
      tpu.vector_store %arg4[%c0_22, %c0_23, %c0_24], %17 {strides = array<i32>} : memref<1x1x8xf32, #tpu.memory_space<vmem>>, vector<1x1x8xf32>,
    } else {
    }
    %c0 = arith.constant 0 : index
    %c0_1 = arith.constant 0 : index
    %c0_2 = arith.constant 0 : index
    %c0_3 = arith.constant 0 : index
    %3 = vector.load %arg2[%c0, %c0_1, %c0_2, %c0_3] : memref<1x16x8x8xf32, #tpu.memory_space<vmem>>, vector<1x16x8x8xf32>
    %c0_4 = arith.constant 0 : index
    %c0_5 = arith.constant 0 : index
    %c0_6 = arith.constant 0 : index
    %4 = vector.load %arg3[%c0_4, %c0_5, %c0_6] : memref<1x1x8xf32, #tpu.memory_space<vmem>>, vector<1x1x8xf32>
    %cst = arith.constant dense<0.000000e+00> : vector<8xf32>
    %5 = vector.multi_reduction <add>, %3, %cst [0, 1, 2] : vector<1x16x8x8xf32> to vector<8xf32>
    %6 = vector.shape_cast %5 : vector<8xf32> to vector<1x1x8xf32>
    %7 = arith.addf %4, %6 : vector<1x1x8xf32>
    %c0_7 = arith.constant 0 : index
    %c0_8 = arith.constant 0 : index
    %c0_9 = arith.constant 0 : index
    %8 = vector.load %arg3[%c0_7, %c0_8, %c0_9] : memref<1x1x8xf32, #tpu.memory_space<vmem>>, vector<1x1x8xf32>
    tpu.vector_store %arg3[%c0_7, %c0_8, %c0_9], %7 {strides = array<i32>} : memref<1x1x8xf32, #tpu.memory_space<vmem>>, vector<1x1x8xf32>,
    %c0_10 = arith.constant 0 : index
    %c0_11 = arith.constant 0 : index
    %c0_12 = arith.constant 0 : index
    %9 = vector.load %arg4[%c0_10, %c0_11, %c0_12] : memref<1x1x8xf32, #tpu.memory_space<vmem>>, vector<1x1x8xf32>
    %10 = arith.mulf %3, %3 : vector<1x16x8x8xf32>
    %cst_13 = arith.constant dense<0.000000e+00> : vector<8xf32>
    %11 = vector.multi_reduction <add>, %10, %cst_13 [0, 1, 2] : vector<1x16x8x8xf32> to vector<8xf32>
    %12 = vector.shape_cast %11 : vector<8xf32> to vector<1x1x8xf32>
    %13 = arith.addf %9, %12 : vector<1x1x8xf32>
    %c0_14 = arith.constant 0 : index
    %c0_15 = arith.constant 0 : index
    %c0_16 = arith.constant 0 : index
    %14 = vector.load %arg4[%c0_14, %c0_15, %c0_16] : memref<1x1x8xf32, #tpu.memory_space<vmem>>, vector<1x1x8xf32>
    tpu.vector_store %arg4[%c0_14, %c0_15, %c0_16], %13 {strides = array<i32>} : memref<1x1x8xf32, #tpu.memory_space<vmem>>, vector<1x1x8xf32>,
    return
  }
  func.func @transform_0(%arg0: i32, %arg1: i32) -> (i32, i32, i32, i32) {
    %c0_i32 = arith.constant 0 : i32
    %c0_i32_0 = arith.constant 0 : i32
    %c0_i32_1 = arith.constant 0 : i32
    return %arg0, %arg1, %c0_i32, %c0_i32_0 : i32, i32, i32, i32
  }
  func.func @transform_1(%arg0: i32, %arg1: i32) -> (i32, i32, i32) {
    %c0_i32 = arith.constant 0 : i32
    %c0_i32_0 = arith.constant 0 : i32
    %c0_i32_1 = arith.constant 0 : i32
    return %arg0, %c0_i32, %c0_i32_0 : i32, i32, i32
  }
  func.func @transform_2(%arg0: i32, %arg1: i32) -> (i32, i32, i32) {
    %c0_i32 = arith.constant 0 : i32
    %c0_i32_0 = arith.constant 0 : i32
    %c0_i32_1 = arith.constant 0 : i32
    return %arg0, %c0_i32, %c0_i32_0 : i32, i32, i32
  }
}

</mosaic_0001>

<llo_original>
// kernel: tpu_custom_call.1
$region0: #{tpu_custom_call.1}
  #allocation0 [shape = 'u32[]', space=smem, size = 0x4, offset = 0x4, fixed_abs, tag = 'smem constant byte address 0x4 - core index']
  #allocation1 [shape = 'u32[144,128]{1,0:T(1,128)}', space=vmem, size = 0x12000, scoped, tag = 'internal scratch']
  %s0 = inlined_call_operand.vmem [shape: f32[2,16,8,8], index: 0, kind: input, shape index: {}]
  %s1 = inlined_call_operand.hbm [shape: f32[2,1,8], index: 1, kind: output, shape index: {0}]
  %s2 = inlined_call_operand.hbm [shape: f32[2,1,8], index: 2, kind: output, shape index: {1}]
  %3 = xla_tuple %s1, %s2
  %s4 = sld [smem:[#allocation0]]
  $region49: #{tpu_custom_call.1} parent=0
    _
  %s6 = ssub.s32 1, %s4
  %s7 = scalar_select 0, %s6, %s4
  $region1: #{tpu_custom_call.1} parent=0
    #allocation2 [shape = 'u8[1024]{0}', space=vmem, size = 0x400, scoped, tag = 'output window, operand 0']
    #allocation3 [shape = 's32[2]{0}', space=sflag, size = 0x8, scoped, tag = 'scoped memory for tpu_custom_call.1']
    #allocation4 [shape = 'u8[1024]{0}', space=vmem, size = 0x400, scoped, tag = 'output window, operand 1']
    #allocation5 [shape = 's32[2]{0}', space=sflag, size = 0x8, scoped, tag = 'scoped memory for tpu_custom_call.1']
    %8 = vsyncpa [#allocation3], 0
    %s9 = scalar_lea.sflag [#allocation3], 1
    %10 = vsyncpa %s9, 0
    %11 = vsyncpa [#allocation5], 0
    %s12 = scalar_lea.sflag [#allocation5], 1
    %13 = vsyncpa %s12, 0
    loop: start=0, step=1, limit=4
    $region2: #{tpu_custom_call.1} parent=1 // loop_pre_header
      _
    $region3: #{tpu_custom_call.1} parent=1 // loop_header
      %s15 = sphi 0, %s19
      %p16 = scmp.ge.s32.totalorder %s15, 4
      %s22 = sphi 0, %s34
      %s23 = sphi 0, %s30
      %s24 = sphi 0, %s22
      %s25 = sphi 0, %s23
      %s26 = sphi 0, %s24
      %s27 = sphi 0, %s25
      %s39 = sphi 0, %s41
      %s42 = sphi 0, %s39
      %s43 = sphi 0, %s42
      %s59 = sphi 0, %s43
      %s65 = sphi 0, %s67
      %s68 = sphi 0, %s65
      %s69 = sphi 0, %s68
      %s85 = sphi 0, %s69
      %s91 = sphi 0, %s93
      %s94 = sphi 0, %s91
      %s95 = sphi 0, %s94
      %s111 = sphi 0, %s95
    $region4: #{tpu_custom_call.1} parent=1 // loop_header_branch
      %18 = sbr.rel (%p16) target = $region8
    $region5: #{tpu_custom_call.1} parent=1 // loop_body
      %s20 = ssub.s32 %s15, 1
      %s21 = ssub.s32 %s15, 2
      %s28 = sadd.s32 1, %s23
      %p29 = scmp.ge.s32.totalorder %s28, 1
      %s30 = scalar_select %p29, 0, %s28
      %s31 = sadd.s32 1, %s22
      %s32 = scalar_select %p29, %s31, %s22
      %p33 = scmp.ge.s32.totalorder %s32, 2
      %s34 = scalar_select %p33, 0, %s32
      %s35 = ssub.s32 %s22, %s34
      %s36 = ssub.s32 %s23, %s30
      %s37 = sor.u32 %s35, %s36
      %p38 = scmp.eq.s32.totalorder %s37, 0
      %s40 = sadd.s32 %s39, 1
      %s41 = scalar_select %p38, %s39, %s40
      %p44 = pneg %p38
      %p45 = scmp.eq.s32.totalorder %s15, 1
      %p46 = por %p44, %p45
      %p47 = scmp.ne.s32.totalorder %s39, %s42
      %p48 = scmp.eq.s32.totalorder %s15, 0
      %p49 = por %p47, %p48
      %p50 = scmp.ne.s32.totalorder %s39, %s42
      %p51 = scmp.eq.s32.totalorder %s20, 1
      %p52 = por %p50, %p51
      %p53 = scmp.ne.s32.totalorder %s42, %s43
      %p54 = scmp.eq.s32.totalorder %s20, 0
      %p55 = por %p53, %p54
      %p56 = scmp.ne.s32.totalorder %s42, %s43
      %p57 = scmp.eq.s32.totalorder %s21, 1
      %p58 = por %p56, %p57
      %p60 = scmp.ne.s32.totalorder %s43, %s59
      %p61 = scmp.eq.s32.totalorder %s21, 0
      %p62 = por %p60, %p61
      %s63 = ssub.s32 %s22, %s34
      %p64 = scmp.eq.s32.totalorder %s63, 0
      %s66 = sadd.s32 %s65, 1
      %s67 = scalar_select %p64, %s65, %s66
      %p70 = pneg %p64
      %p71 = scmp.eq.s32.totalorder %s15, 1
      %p72 = por %p70, %p71
      %p73 = scmp.ne.s32.totalorder %s65, %s68
      %p74 = scmp.eq.s32.totalorder %s15, 0
      %p75 = por %p73, %p74
      %p76 = scmp.ne.s32.totalorder %s65, %s68
      %p77 = scmp.eq.s32.totalorder %s20, 1
      %p78 = por %p76, %p77
      %p79 = scmp.ne.s32.totalorder %s68, %s69
      %p80 = scmp.eq.s32.totalorder %s20, 0
      %p81 = por %p79, %p80
      %p82 = scmp.ne.s32.totalorder %s68, %s69
      %p83 = scmp.eq.s32.totalorder %s21, 1
      %p84 = por %p82, %p83
      %p86 = scmp.ne.s32.totalorder %s69, %s85
      %p87 = scmp.eq.s32.totalorder %s21, 0
      %p88 = por %p86, %p87
      %s89 = ssub.s32 %s22, %s34
      %p90 = scmp.eq.s32.totalorder %s89, 0
      %s92 = sadd.s32 %s91, 1
      %s93 = scalar_select %p90, %s91, %s92
      %p96 = pneg %p90
      %p97 = scmp.eq.s32.totalorder %s15, 1
      %p98 = por %p96, %p97
      %p99 = scmp.ne.s32.totalorder %s91, %s94
      %p100 = scmp.eq.s32.totalorder %s15, 0
      %p101 = por %p99, %p100
      %p102 = scmp.ne.s32.totalorder %s91, %s94
      %p103 = scmp.eq.s32.totalorder %s20, 1
      %p104 = por %p102, %p103
      %p105 = scmp.ne.s32.totalorder %s94, %s95
      %p106 = scmp.eq.s32.totalorder %s20, 0
      %p107 = por %p105, %p106
      %p108 = scmp.ne.s32.totalorder %s94, %s95
      %p109 = scmp.eq.s32.totalorder %s21, 1
      %p110 = por %p108, %p109
      %p112 = scmp.ne.s32.totalorder %s95, %s111
      %p113 = scmp.eq.s32.totalorder %s21, 0
      %p114 = por %p112, %p113
      %p115 = scmp.le.s32.totalorder 1, %s15
      %p116 = scmp.lt.s32.totalorder %s15, 3
      %p117 = pnand %p115, %p116
      %p118 = pneg %p117
      // Predicated region
      $region9: #{tpu_custom_call.1} parent=5 // pred_check
        _
      $region10: #{tpu_custom_call.1} parent=5 // pred_check_branch
        %120 = sbr.rel (%p117) target = $region12
      $region11: #{tpu_custom_call.1} parent=5 // pred_region
        %s121 = ssub.s32 %s15, 1
      $region12: #{tpu_custom_call.1} parent=5 // pred_fallthru
        _
      %p122 = scmp.lt.s32.totalorder %s15, 2
      // Predicated region
      $region13: #{tpu_custom_call.1} parent=5 // pred_check
        %p123 = pneg %p122
      $region14: #{tpu_custom_call.1} parent=5 // pred_check_branch
        %125 = sbr.rel (%p123) target = $region16
      $region15: #{tpu_custom_call.1} parent=5 // pred_region
        // Predicated region
        $region17: #{tpu_custom_call.1} parent=15 // pred_check
          %p126 = pneg %p49
        $region18: #{tpu_custom_call.1} parent=15 // pred_check_branch
          %128 = sbr.rel (%p126) target = $region20
        $region19: #{tpu_custom_call.1} parent=15 // pred_region
          %s129 = smul.u32 16, %s23
          %p130 = scmp.lt.s32.totalorder %s22, 1
          %s131 = scalar_select %p130, %s22, 1
          %p132 = scmp.lt.s32.totalorder %s129, 15
          %s133 = scalar_select %p132, %s129, 15
          %s134 = smul.addr %s131, 16
          %s135 = sadd.s32 %s133, %s134
          %s136 = smul.addr %s135, 8
          %s137 = scalar_lea.vmem %s0, %s136
          %s138 = smul.u32 16, %s23
        $region20: #{tpu_custom_call.1} parent=15 // pred_fallthru
          _
      $region16: #{tpu_custom_call.1} parent=5 // pred_fallthru
        _
      %p139 = scmp.le.s32.totalorder 1, %s15
      %p140 = scmp.lt.s32.totalorder %s15, 3
      %p141 = pnand %p139, %p140
      %p142 = pneg %p141
      // Predicated region
      $region21: #{tpu_custom_call.1} parent=5 // pred_check
        _
      $region22: #{tpu_custom_call.1} parent=5 // pred_check_branch
        %144 = sbr.rel (%p141) target = $region24
      $region23: #{tpu_custom_call.1} parent=5 // pred_region
        %s145 = ssub.s32 %s15, 1
        %s146 = smul.u32 16, %s25
        %p147 = scmp.lt.s32.totalorder %s24, 1
        %s148 = scalar_select %p147, %s24, 1
        %p149 = scmp.lt.s32.totalorder %s146, 15
        %s150 = scalar_select %p149, %s146, 15
        %s151 = smul.addr %s148, 16
        %s152 = sadd.s32 %s150, %s151
        %s153 = smul.addr %s152, 8
        %s154 = scalar_lea.vmem %s0, %s153
        %p155 = pneg %p55
        %p156 = pneg %p52
        %p157 = pneg %p81
        %p158 = pneg %p78
        %s159 = sand.u32 %s68, 1
        %s160 = scalar_lea.sflag [#allocation3], %s159
        %s161 = sand.u32 %s68, 1
        %s162 = scalar_lea.vmem [#allocation2], %s161
        %p163 = pneg %p107
        %p164 = pneg %p104
        %s165 = sand.u32 %s94, 1
        %s166 = scalar_lea.sflag [#allocation5], %s165
        %s167 = sand.u32 %s94, 1
        %s168 = scalar_lea.vmem [#allocation4], %s167
        %s169 = smul.u32 16, %s25
        %p170 = scmp.lt.s32.totalorder %s24, 1
        %s171 = scalar_select %p170, %s24, 1
        %p172 = scmp.lt.s32.totalorder %s169, 15
        %s173 = scalar_select %p172, %s169, 15
        %s174 = smul.addr %s171, 16
        %s175 = sadd.s32 %s173, %s174
        %s176 = smul.addr %s175, 8
        %s177 = scalar_lea.vmem %s0, %s176
        %s178 = smul.u32 16, %s25
        %p179 = scmp.eq.s32.totalorder %s25, 0
        // Predicated region
        $region25: #{tpu_custom_call.1} parent=23 // pred_check
          %p180 = pneg %p179
        $region26: #{tpu_custom_call.1} parent=23 // pred_check_branch
          %182 = sbr.rel (%p180) target = $region28
        $region27: #{tpu_custom_call.1} parent=23 // pred_region
          %vm183 = vcmask 57344
          %184 = vst.msk [vmem:[%s162] sm:$0x1] %vm183, 0.0
          %185 = vst.msk [vmem:[%s168] sm:$0x1] %vm183, 0.0
        $region28: #{tpu_custom_call.1} parent=23 // pred_fallthru
          _
        %v186 = vld [vmem:[%s177] sm:$0xff]
        %v187 = vld [vmem:[%s177 + $0x8] sm:$0xff]
        %v188 = vld [vmem:[%s177 + $0x10] sm:$0xff]
        %v189 = vld [vmem:[%s177 + $0x18] sm:$0xff]
        %v190 = vld [vmem:[%s177 + $0x20] sm:$0xff]
        %v191 = vld [vmem:[%s177 + $0x28] sm:$0xff]
        %v192 = vld [vmem:[%s177 + $0x30] sm:$0xff]
        %v193 = vld [vmem:[%s177 + $0x38] sm:$0xff]
        %v194 = vld [vmem:[%s177 + $0x40] sm:$0xff]
        %v195 = vld [vmem:[%s177 + $0x48] sm:$0xff]
        %v196 = vld [vmem:[%s177 + $0x50] sm:$0xff]
        %v197 = vld [vmem:[%s177 + $0x58] sm:$0xff]
        %v198 = vld [vmem:[%s177 + $0x60] sm:$0xff]
        %v199 = vld [vmem:[%s177 + $0x68] sm:$0xff]
        %v200 = vld [vmem:[%s177 + $0x70] sm:$0xff]
        %v201 = vld [vmem:[%s177 + $0x78] sm:$0xff]
        %v202 = vld [vmem:[%s162] sm:$0x1]
        %vm203 = vcmask 64512
        %v204 = vsel %vm203, %v186, 0.0
        %v205 = vsel %vm203, %v187, 0.0
        %v206 = vadd.f32 %v204, %v205
        %v207 = vsel %vm203, %v188, 0.0
        %v208 = vadd.f32 %v206, %v207
        %v209 = vsel %vm203, %v189, 0.0
        %v210 = vadd.f32 %v208, %v209
        %v211 = vsel %vm203, %v190, 0.0
        %v212 = vadd.f32 %v210, %v211
        %v213 = vsel %vm203, %v191, 0.0
        %v214 = vadd.f32 %v212, %v213
        %v215 = vsel %vm203, %v192, 0.0
        %v216 = vadd.f32 %v214, %v215
        %v217 = vsel %vm203, %v193, 0.0
        %v218 = vadd.f32 %v216, %v217
        %v219 = vsel %vm203, %v194, 0.0
        %v220 = vadd.f32 %v218, %v219
        %v221 = vsel %vm203, %v195, 0.0
        %v222 = vadd.f32 %v220, %v221
        %v223 = vsel %vm203, %v196, 0.0
        %v224 = vadd.f32 %v222, %v223
        %v225 = vsel %vm203, %v197, 0.0
        %v226 = vadd.f32 %v224, %v225
        %v227 = vsel %vm203, %v198, 0.0
        %v228 = vadd.f32 %v226, %v227
        %v229 = vsel %vm203, %v199, 0.0
        %v230 = vadd.f32 %v228, %v229
        %v231 = vsel %vm203, %v200, 0.0
        %v232 = vadd.f32 %v230, %v231
        %v233 = vsel %vm203, %v201, 0.0
        %v234 = vadd.f32 %v232, %v233
        %v235 = vrot.slane %v234, 4
        %v236 = vadd.f32 %v234, %v235
        %v237 = vrot.slane %v236, 2
        %v238 = vadd.f32 %v236, %v237
        %v239 = vrot.slane %v238, 1
        %v240 = vadd.f32 %v238, %v239
        %v241 = vadd.f32 %v202, %v240
        %vm242 = vcmask 57344
        %243 = vst.msk [vmem:[%s162] sm:$0x1] %vm242, %v241
        %v244 = vld [vmem:[%s168] sm:$0x1]
        %v245 = vmul.f32 %v186, %v186
        %v246 = vmul.f32 %v187, %v187
        %v247 = vmul.f32 %v188, %v188
        %v248 = vmul.f32 %v189, %v189
        %v249 = vmul.f32 %v190, %v190
        %v250 = vmul.f32 %v191, %v191
        %v251 = vmul.f32 %v192, %v192
        %v252 = vmul.f32 %v193, %v193
        %v253 = vmul.f32 %v194, %v194
        %v254 = vmul.f32 %v195, %v195
        %v255 = vmul.f32 %v196, %v196
        %v256 = vmul.f32 %v197, %v197
        %v257 = vmul.f32 %v198, %v198
        %v258 = vmul.f32 %v199, %v199
        %v259 = vmul.f32 %v200, %v200
        %v260 = vmul.f32 %v201, %v201
        %v261 = vsel %vm203, %v245, 0.0
        %v262 = vsel %vm203, %v246, 0.0
        %v263 = vadd.f32 %v261, %v262
        %v264 = vsel %vm203, %v247, 0.0
        %v265 = vadd.f32 %v263, %v264
        %v266 = vsel %vm203, %v248, 0.0
        %v267 = vadd.f32 %v265, %v266
        %v268 = vsel %vm203, %v249, 0.0
        %v269 = vadd.f32 %v267, %v268
        %v270 = vsel %vm203, %v250, 0.0
        %v271 = vadd.f32 %v269, %v270
        %v272 = vsel %vm203, %v251, 0.0
        %v273 = vadd.f32 %v271, %v272
        %v274 = vsel %vm203, %v252, 0.0
        %v275 = vadd.f32 %v273, %v274
        %v276 = vsel %vm203, %v253, 0.0
        %v277 = vadd.f32 %v275, %v276
        %v278 = vsel %vm203, %v254, 0.0
        %v279 = vadd.f32 %v277, %v278
        %v280 = vsel %vm203, %v255, 0.0
        %v281 = vadd.f32 %v279, %v280
        %v282 = vsel %vm203, %v256, 0.0
        %v283 = vadd.f32 %v281, %v282
        %v284 = vsel %vm203, %v257, 0.0
        %v285 = vadd.f32 %v283, %v284
        %v286 = vsel %vm203, %v258, 0.0
        %v287 = vadd.f32 %v285, %v286
        %v288 = vsel %vm203, %v259, 0.0
        %v289 = vadd.f32 %v287, %v288
        %v290 = vsel %vm203, %v260, 0.0
        %v291 = vadd.f32 %v289, %v290
        %v292 = vrot.slane %v291, 4
        %v293 = vadd.f32 %v291, %v292
        %v294 = vrot.slane %v293, 2
        %v295 = vadd.f32 %v293, %v294
        %v296 = vrot.slane %v295, 1
        %v297 = vadd.f32 %v295, %v296
        %v298 = vadd.f32 %v244, %v297
        %299 = vst.msk [vmem:[%s168] sm:$0x1] %vm242, %v298
        %s300 = sand.u32 %s68, 1
        %s301 = scalar_lea.sflag [#allocation3], %s300
        %s302 = sand.u32 %s68, 1
        %s303 = scalar_lea.vmem [#allocation2], %s302
        %s304 = sand.u32 %s94, 1
        %s305 = scalar_lea.sflag [#allocation5], %s304
        %s306 = sand.u32 %s94, 1
        %s307 = scalar_lea.vmem [#allocation4], %s306
        // Predicated region
        $region29: #{tpu_custom_call.1} parent=23 // pred_check
          %p308 = pneg %p78
        $region30: #{tpu_custom_call.1} parent=23 // pred_check_branch
          %310 = sbr.rel (%p308) target = $region32
        $region31: #{tpu_custom_call.1} parent=23 // pred_region
          %s312 = ssub.s32 16, 16
          %313 = vsyncadd %s301, %s312
          %s314 = smul.addr %s24, 16
          %s315 = scalar_lea.hbm %s1, %s314
          %s317 = sshll.u32 %s303, 4
          %s318 = int_to_ptr.vmem [resolvable:$true] %s317
          %320 = dma.vmem_to_hbm [thread:$0]  %s318, 16, %s315, %s301
        $region32: #{tpu_custom_call.1} parent=23 // pred_fallthru
          _
        // Predicated region
        $region33: #{tpu_custom_call.1} parent=23 // pred_check
          %p321 = pneg %p104
        $region34: #{tpu_custom_call.1} parent=23 // pred_check_branch
          %323 = sbr.rel (%p321) target = $region36
        $region35: #{tpu_custom_call.1} parent=23 // pred_region
          %s325 = ssub.s32 16, 16
          %326 = vsyncadd %s305, %s325
          %s327 = smul.addr %s24, 16
          %s328 = scalar_lea.hbm %s2, %s327
          %s330 = sshll.u32 %s307, 4
          %s331 = int_to_ptr.vmem [resolvable:$true] %s330
          %333 = dma.vmem_to_hbm [thread:$0]  %s331, 16, %s328, %s305
        $region36: #{tpu_custom_call.1} parent=23 // pred_fallthru
          _
      $region24: #{tpu_custom_call.1} parent=5 // pred_fallthru
        _
      %p334 = scmp.le.s32.totalorder 2, %s15
      // Predicated region
      $region37: #{tpu_custom_call.1} parent=5 // pred_check
        %p335 = pneg %p334
      $region38: #{tpu_custom_call.1} parent=5 // pred_check_branch
        %337 = sbr.rel (%p335) target = $region40
      $region39: #{tpu_custom_call.1} parent=5 // pred_region
        %s338 = ssub.s32 %s15, 2
        // Predicated region
        $region41: #{tpu_custom_call.1} parent=39 // pred_check
          %p339 = pneg %p84
        $region42: #{tpu_custom_call.1} parent=39 // pred_check_branch
          %341 = sbr.rel (%p339) target = $region44
        $region43: #{tpu_custom_call.1} parent=39 // pred_region
          %s342 = sand.u32 %s69, 1
          %s343 = scalar_lea.sflag [#allocation3], %s342
          %s344 = sand.u32 %s69, 1
          %s345 = scalar_lea.vmem [#allocation2], %s344
          %346 = dma.done %s343, 16
        $region44: #{tpu_custom_call.1} parent=39 // pred_fallthru
          _
        // Predicated region
        $region45: #{tpu_custom_call.1} parent=39 // pred_check
          %p347 = pneg %p110
        $region46: #{tpu_custom_call.1} parent=39 // pred_check_branch
          %349 = sbr.rel (%p347) target = $region48
        $region47: #{tpu_custom_call.1} parent=39 // pred_region
          %s350 = sand.u32 %s95, 1
          %s351 = scalar_lea.sflag [#allocation5], %s350
          %s352 = sand.u32 %s95, 1
          %s353 = scalar_lea.vmem [#allocation4], %s352
          %354 = dma.done %s351, 16
        $region48: #{tpu_custom_call.1} parent=39 // pred_fallthru
          _
      $region40: #{tpu_custom_call.1} parent=5 // pred_fallthru
        _
    $region6: #{tpu_custom_call.1} parent=1 // loop_footer
      %s19 = sadd.s32 1, %s15
    $region7: #{tpu_custom_call.1} parent=1 // loop_footer_branch
      %14 = sbr.rel target = $region3
    $region8: #{tpu_custom_call.1} parent=1 // loop_exit
      _
    %355 = vsyncpa [#allocation3], 1
    %s356 = scalar_lea.sflag [#allocation3], 1
    %357 = vsyncpa %s356, 1
    %358 = vsyncpa [#allocation5], 1
    %s359 = scalar_lea.sflag [#allocation5], 1
    %360 = vsyncpa %s359, 1

</llo_original>
